<compile_context>
chip_gen: v5e
topology: v5e:2x2
jax: 0.10.0
libtpu: 0.0.40
codegen_flags: <defaults>
</compile_context>

<pallas_src>
import functools

import jax
import jax.numpy as jnp
from jax.experimental import pallas as pl
from jax.experimental.pallas import tpu as pltpu

THRESH = 0.5
MARGIN = 0.1
SCALE_POS = 2.0
SCALE_NEG = 40.0
EPSILON = 1e-5


def _ms_loss_kernel(scalar_ref, fa_ref, f_all_ref, lab_all_ref, lab_anc_ref, out_ref):
    """One anchor tile: computes per-anchor losses into a lane-dense (1, TM) block.

    scalar_ref : SMEM int32[2]  -> [label_num, true batch size B]
    fa_ref     : VMEM bf16 (TM, D)     anchor features for this tile
    f_all_ref  : VMEM bf16 (B_pad, D)  all features (resident across grid steps)
    lab_all_ref: VMEM int32 (B_pad, 1) all labels (resident)
    lab_anc_ref: VMEM int32 (1, TM)    labels of this tile's anchors
    out_ref    : VMEM f32  (1, TM)     per-anchor loss (0 where anchor is skipped)
    """
    label_num = scalar_ref[0]
    b_real = scalar_ref[1]

    tile = pl.program_id(0)
    TM = fa_ref.shape[0]
    BP = f_all_ref.shape[0]

    # sim[j, a] = <feats[j], anchor[a]>   (bf16 x bf16 -> f32 on the MXU)
    sim = jax.lax.dot_general(
        f_all_ref[...], fa_ref[...],
        dimension_numbers=(((1,), (1,)), ((), ())),
        preferred_element_type=jnp.float32,
    )  # (BP, TM) f32

    same = lab_all_ref[...] == lab_anc_ref[...]                    # (BP, TM)

    row_idx = jax.lax.broadcasted_iota(jnp.int32, (BP, TM), 0)     # sample index j
    col_idx = jax.lax.broadcasted_iota(jnp.int32, (BP, TM), 1)     # local anchor index
    anchor_gidx = col_idx + tile * TM                               # global anchor index
    row_valid = row_idx < b_real                                    # mask padded rows
    not_self = row_idx != anchor_gidx                               # drop self pair

    # ---------------- positive candidates (pos_pair_) ----------------
    pos_mask_ = same & (sim < (1.0 - EPSILON)) & not_self & row_valid
    has_pos = jnp.any(pos_mask_, axis=0, keepdims=True)             # (1, TM)
    min_pos = jnp.min(jnp.where(pos_mask_, sim, jnp.inf),
                      axis=0, keepdims=True)                        # (1, TM)

    # ---------------- negative candidates (neg_pair_) ----------------
    neg_mask_ = jnp.logical_not(same) & row_valid
    has_neg = jnp.any(neg_mask_, axis=0, keepdims=True)
    max_neg = jnp.max(jnp.where(neg_mask_, sim, -jnp.inf),
                      axis=0, keepdims=True)

    neg_thr = jnp.where(has_pos, min_pos, jnp.float32(0.2))
    pos_thr = jnp.where(has_neg, max_neg, jnp.float32(0.8))

    # ---------------- hard mining + positive reduction first ----------------
    pos_mask = pos_mask_ & ((sim - MARGIN) < pos_thr)
    pos_cnt = jnp.sum(pos_mask.astype(jnp.float32), axis=0, keepdims=True)
    pos_sum = jnp.sum(
        jnp.where(pos_mask, jnp.exp(-SCALE_POS * (sim - THRESH)), 0.0),
        axis=0, keepdims=True)
    pos_loss = (1.0 / SCALE_POS) * jnp.log(1.0 + pos_sum)

    # ---------------- negative reduction ----------------
    neg_mask = neg_mask_ & ((sim + MARGIN) > neg_thr)
    neg_cnt = jnp.sum(neg_mask.astype(jnp.float32), axis=0, keepdims=True)
    neg_sum = jnp.sum(
        jnp.where(neg_mask, jnp.exp(SCALE_NEG * (sim - THRESH)), 0.0),
        axis=0, keepdims=True)
    neg_loss = (1.0 / SCALE_NEG) * jnp.log(1.0 + neg_sum)

    # anchor loop only covers i in range(B - label_num); skip anchors with no
    # mined pos/neg pairs (matches the `continue` in the reference).
    anchor_ok = (jax.lax.broadcasted_iota(jnp.int32, (1, TM), 1) + tile * TM) < (
        b_real - label_num)
    valid = anchor_ok & (pos_cnt >= 1.0) & (neg_cnt >= 1.0)

    out_ref[...] = jnp.where(valid, pos_loss + neg_loss, 0.0)


def _round_up(x, m):
    return (x + m - 1) // m * m


@functools.partial(jax.jit, static_argnames=("block_anchors", "vmem_limit_bytes"))
def multi_similarity_loss(feats, labels, label_num, *, block_anchors=128,
                          vmem_limit_bytes=None):
    """feats: (B, D) float, labels: (B,) int, label_num: int scalar.

    block_anchors: anchor-tile size. 128 is safe on v5e/v6e/v7x; 256 (with a raised
    vmem_limit_bytes) pays off on v5e/v6e for large B.
    """
    B, D = feats.shape

    # Anchor tile size / padded batch.
    if B <= block_anchors:
        tm = max(_round_up(B, 8), 8)          # single tile; block == full array dims
        b_pad = tm
    else:
        assert block_anchors % 128 == 0, "block_anchors must be a multiple of 128"
        tm = block_anchors
        b_pad = _round_up(B, tm)
    pad = b_pad - B

    feats_bf16 = feats.astype(jnp.bfloat16)
    labels_i32 = labels.astype(jnp.int32)
    if pad:
        feats_bf16 = jnp.pad(feats_bf16, ((0, pad), (0, 0)))
        labels_i32 = jnp.pad(labels_i32, (0, pad), constant_values=-1)

    lab_col = labels_i32.reshape(b_pad, 1)
    lab_row = labels_i32.reshape(1, b_pad)
    scalars = jnp.array([label_num, B], dtype=jnp.int32)

    grid = (b_pad // tm,)
    grid_spec = pltpu.PrefetchScalarGridSpec(
        num_scalar_prefetch=1,
        grid=grid,
        in_specs=[
            # anchor features for this tile (pipelined / double-buffered)
            pl.BlockSpec((tm, D), lambda i, s: (i, 0)),
            # full feature matrix, resident across grid steps
            pl.BlockSpec((b_pad, D), lambda i, s: (0, 0)),
            # full label column, resident
            pl.BlockSpec((b_pad, 1), lambda i, s: (0, 0)),
            # anchor labels for this tile
            pl.BlockSpec((1, tm), lambda i, s: (0, i)),
        ],
        # lane-dense per-anchor loss block, one per grid step
        out_specs=pl.BlockSpec((1, tm), lambda i, s: (0, i)),
    )

    per_anchor = pl.pallas_call(
        _ms_loss_kernel,
        out_shape=jax.ShapeDtypeStruct((1, b_pad), jnp.float32),
        grid_spec=grid_spec,
        compiler_params=pltpu.CompilerParams(
            dimension_semantics=("parallel",),     # independent anchor tiles (megacore on v7x)
            vmem_limit_bytes=vmem_limit_bytes,
        ),
    )(scalars, feats_bf16, feats_bf16, lab_col, lab_row)

    # Padded / skipped anchors wrote 0, so the plain sum matches the reference;
    # divide by the true batch size (len(loss)==0 -> 0.0, same as the reference).
    return jnp.sum(per_anchor) / jnp.float32(B)


if __name__ == "__main__":
    key = jax.random.PRNGKey(0)
    B, D = 8, 32
    # L2-normalized embeddings, as typically fed to a multi-similarity loss.
    feats = jax.random.normal(key, (B, D), dtype=jnp.float32)
    feats = feats / jnp.linalg.norm(feats, axis=1, keepdims=True)
    labels = jnp.array([0, 0, 1, 1, 2, 2, 3, 3], dtype=jnp.int32)
    label_num = 2

    loss = multi_similarity_loss(feats, labels, label_num)
    jax.block_until_ready(loss)
    print("KERNEL_OK")
</pallas_src>

<mosaic_0001>
module attributes {stable_mosaic.version = 11 : i64} {
  func.func @_ms_loss_kernel(%arg0: i32, %arg1: memref<2xi32, #tpu.memory_space<smem>>, %arg2: memref<8x32xbf16, #tpu.memory_space<vmem>>, %arg3: memref<8x32xbf16, #tpu.memory_space<vmem>>, %arg4: memref<8x1xi32, #tpu.memory_space<vmem>>, %arg5: memref<1x8xi32, #tpu.memory_space<vmem>>, %arg6: memref<1x8xf32, #tpu.memory_space<vmem>>) attributes {dimension_semantics = [#tpu.dimension_semantics<parallel>], iteration_bounds = array<i64: 1>, scalar_prefetch = 1 : i64, scratch_operands = 0 : i64, tpu.core_type = #tpu.core_type<tc>, window_params = [{transform_indices = @transform_0, window_bounds = array<i64: 8, 32>}, {pipeline_mode = #tpu.pipeline_mode<synchronous>, transform_indices = @transform_1, window_bounds = array<i64: 8, 32>}, {pipeline_mode = #tpu.pipeline_mode<synchronous>, transform_indices = @transform_2, window_bounds = array<i64: 8, 1>}, {transform_indices = @transform_3, window_bounds = array<i64: 1, 8>}, {transform_indices = @transform_4, window_bounds = array<i64: 1, 8>}]} {
    %c0 = arith.constant 0 : index
    %0 = memref.load %arg1[%c0] : memref<2xi32, #tpu.memory_space<smem>>
    %c1 = arith.constant 1 : index
    %1 = memref.load %arg1[%c1] : memref<2xi32, #tpu.memory_space<smem>>
    %c0_0 = arith.constant 0 : index
    %c0_1 = arith.constant 0 : index
    %2 = vector.load %arg3[%c0_0, %c0_1] : memref<8x32xbf16, #tpu.memory_space<vmem>>, vector<8x32xbf16>
    %c0_2 = arith.constant 0 : index
    %c0_3 = arith.constant 0 : index
    %3 = vector.load %arg2[%c0_2, %c0_3] : memref<8x32xbf16, #tpu.memory_space<vmem>>, vector<8x32xbf16>
    %cst = arith.constant dense<0.000000e+00> : vector<8x8xf32>
    %4 = tpu.matmul %2, %3, %cst {dimension_numbers = #tpu.dot_dimension_numbers<[1], [1], [0], [0], [0, 0, 1, 0], [], []>} : vector<8x32xbf16>, vector<8x32xbf16>, vector<8x8xf32> -> vector<8x8xf32>
    %c0_4 = arith.constant 0 : index
    %c0_5 = arith.constant 0 : index
    %5 = vector.load %arg4[%c0_4, %c0_5] : memref<8x1xi32, #tpu.memory_space<vmem>>, vector<8x1xi32>
    %c0_6 = arith.constant 0 : index
    %c0_7 = arith.constant 0 : index
    %6 = vector.load %arg5[%c0_6, %c0_7] : memref<1x8xi32, #tpu.memory_space<vmem>>, vector<1x8xi32>
    %7 = vector.broadcast %5 : vector<8x1xi32> to vector<8x8xi32>
    %8 = vector.broadcast %6 : vector<1x8xi32> to vector<8x8xi32>
    %9 = arith.cmpi eq, %7, %8 : vector<8x8xi32>
    %10 = tpu.iota {dimensions = array<i32: 0>} : vector<8x8xi32>
    %11 = tpu.iota {dimensions = array<i32: 1>} : vector<8x8xi32>
    %c8_i32 = arith.constant 8 : i32
    %12 = arith.muli %arg0, %c8_i32 : i32
    %13 = vector.broadcast %12 : i32 to vector<8x8xi32>
    %14 = arith.addi %11, %13 : vector<8x8xi32>
    %15 = vector.broadcast %1 : i32 to vector<8x8xi32>
    %16 = arith.cmpi slt, %10, %15 : vector<8x8xi32>
    %17 = arith.cmpi ne, %10, %14 : vector<8x8xi32>
    %cst_8 = arith.constant 0.999989986 : f32
    %18 = vector.broadcast %cst_8 : f32 to vector<8x8xf32>
    %19 = arith.cmpf olt, %4, %18 : vector<8x8xf32>
    %20 = arith.andi %9, %19 : vector<8x8xi1>
    %21 = arith.andi %20, %17 : vector<8x8xi1>
    %22 = arith.andi %21, %16 : vector<8x8xi1>
    %cst_9 = arith.constant 1.000000e+00 : f32
    %cst_10 = arith.constant 0.000000e+00 : f32
    %23 = vector.broadcast %cst_9 : f32 to vector<8x8xf32>
    %24 = vector.broadcast %cst_10 : f32 to vector<8x8xf32>
    %25 = arith.select %22, %23, %24 : vector<8x8xi1>, vector<8x8xf32>
    %cst_11 = arith.constant dense<0xFF800000> : vector<8xf32>
    %26 = vector.multi_reduction <maximumf>, %25, %cst_11 [0] : vector<8x8xf32> to vector<8xf32>
    %cst_12 = arith.constant 0.000000e+00 : f32
    %27 = vector.broadcast %cst_12 : f32 to vector<8xf32>
    %28 = arith.cmpf ogt, %26, %27 : vector<8xf32>
    %29 = vector.shape_cast %28 : vector<8xi1> to vector<1x8xi1>
    %cst_13 = arith.constant 0x7F800000 : f32
    %30 = vector.broadcast %cst_13 : f32 to vector<8x8xf32>
    %31 = arith.select %22, %4, %30 : vector<8x8xi1>, vector<8x8xf32>
    %cst_14 = arith.constant dense<0x7F800000> : vector<8xf32>
    %32 = vector.multi_reduction <minimumf>, %31, %cst_14 [0] : vector<8x8xf32> to vector<8xf32>
    %33 = vector.shape_cast %32 : vector<8xf32> to vector<1x8xf32>
    %cst_15 = arith.constant dense<true> : vector<8x8xi1>
    %34 = arith.xori %9, %cst_15 : vector<8x8xi1>
    %35 = arith.andi %34, %16 : vector<8x8xi1>
    %cst_16 = arith.constant 1.000000e+00 : f32
    %cst_17 = arith.constant 0.000000e+00 : f32
    %36 = vector.broadcast %cst_16 : f32 to vector<8x8xf32>
    %37 = vector.broadcast %cst_17 : f32 to vector<8x8xf32>
    %38 = arith.select %35, %36, %37 : vector<8x8xi1>, vector<8x8xf32>
    %cst_18 = arith.constant dense<0xFF800000> : vector<8xf32>
    %39 = vector.multi_reduction <maximumf>, %38, %cst_18 [0] : vector<8x8xf32> to vector<8xf32>
    %cst_19 = arith.constant 0.000000e+00 : f32
    %40 = vector.broadcast %cst_19 : f32 to vector<8xf32>
    %41 = arith.cmpf ogt, %39, %40 : vector<8xf32>
    %42 = vector.shape_cast %41 : vector<8xi1> to vector<1x8xi1>
    %cst_20 = arith.constant 0xFF800000 : f32
    %43 = vector.broadcast %cst_20 : f32 to vector<8x8xf32>
    %44 = arith.select %35, %4, %43 : vector<8x8xi1>, vector<8x8xf32>
    %cst_21 = arith.constant dense<0xFF800000> : vector<8xf32>
    %45 = vector.multi_reduction <maximumf>, %44, %cst_21 [0] : vector<8x8xf32> to vector<8xf32>
    %46 = vector.shape_cast %45 : vector<8xf32> to vector<1x8xf32>
    %cst_22 = arith.constant 2.000000e-01 : f32
    %47 = vector.broadcast %cst_22 : f32 to vector<1x8xf32>
    %48 = arith.select %29, %33, %47 : vector<1x8xi1>, vector<1x8xf32>
    %cst_23 = arith.constant 8.000000e-01 : f32
    %49 = vector.broadcast %cst_23 : f32 to vector<1x8xf32>
    %50 = arith.select %42, %46, %49 : vector<1x8xi1>, vector<1x8xf32>
    %cst_24 = arith.constant 1.000000e-01 : f32
    %51 = vector.broadcast %cst_24 : f32 to vector<8x8xf32>
    %52 = arith.subf %4, %51 : vector<8x8xf32>
    %53 = vector.broadcast %50 : vector<1x8xf32> to vector<8x8xf32>
    %54 = arith.cmpf olt, %52, %53 : vector<8x8xf32>
    %55 = arith.andi %22, %54 : vector<8x8xi1>
    %56 = arith.extui %55 : vector<8x8xi1> to vector<8x8xi32>
    %57 = arith.sitofp %56 : vector<8x8xi32> to vector<8x8xf32>
    %cst_25 = arith.constant dense<0.000000e+00> : vector<8xf32>
    %58 = vector.multi_reduction <add>, %57, %cst_25 [0] : vector<8x8xf32> to vector<8xf32>
    %59 = vector.shape_cast %58 : vector<8xf32> to vector<1x8xf32>
    %cst_26 = arith.constant 5.000000e-01 : f32
    %60 = vector.broadcast %cst_26 : f32 to vector<8x8xf32>
    %61 = arith.subf %4, %60 : vector<8x8xf32>
    %cst_27 = arith.constant -2.000000e+00 : f32
    %62 = vector.broadcast %cst_27 : f32 to vector<8x8xf32>
    %63 = arith.mulf %62, %61 : vector<8x8xf32>
    %64 = math.exp %63 : vector<8x8xf32>
    %cst_28 = arith.constant 0.000000e+00 : f32
    %65 = vector.broadcast %cst_28 : f32 to vector<8x8xf32>
    %66 = arith.select %55, %64, %65 : vector<8x8xi1>, vector<8x8xf32>
    %cst_29 = arith.constant dense<0.000000e+00> : vector<8xf32>
    %67 = vector.multi_reduction <add>, %66, %cst_29 [0] : vector<8x8xf32> to vector<8xf32>
    %68 = vector.shape_cast %67 : vector<8xf32> to vector<1x8xf32>
    %cst_30 = arith.constant 1.000000e+00 : f32
    %69 = vector.broadcast %cst_30 : f32 to vector<1x8xf32>
    %70 = arith.addf %69, %68 : vector<1x8xf32>
    %71 = math.log %70 : vector<1x8xf32>
    %cst_31 = arith.constant 5.000000e-01 : f32
    %72 = vector.broadcast %cst_31 : f32 to vector<1x8xf32>
    %73 = arith.mulf %72, %71 : vector<1x8xf32>
    %cst_32 = arith.constant 1.000000e-01 : f32
    %74 = vector.broadcast %cst_32 : f32 to vector<8x8xf32>
    %75 = arith.addf %4, %74 : vector<8x8xf32>
    %76 = vector.broadcast %48 : vector<1x8xf32> to vector<8x8xf32>
    %77 = arith.cmpf ogt, %75, %76 : vector<8x8xf32>
    %78 = arith.andi %35, %77 : vector<8x8xi1>
    %79 = arith.extui %78 : vector<8x8xi1> to vector<8x8xi32>
    %80 = arith.sitofp %79 : vector<8x8xi32> to vector<8x8xf32>
    %cst_33 = arith.constant dense<0.000000e+00> : vector<8xf32>
    %81 = vector.multi_reduction <add>, %80, %cst_33 [0] : vector<8x8xf32> to vector<8xf32>
    %82 = vector.shape_cast %81 : vector<8xf32> to vector<1x8xf32>
    %cst_34 = arith.constant 5.000000e-01 : f32
    %83 = vector.broadcast %cst_34 : f32 to vector<8x8xf32>
    %84 = arith.subf %4, %83 : vector<8x8xf32>
    %cst_35 = arith.constant 4.000000e+01 : f32
    %85 = vector.broadcast %cst_35 : f32 to vector<8x8xf32>
    %86 = arith.mulf %85, %84 : vector<8x8xf32>
    %87 = math.exp %86 : vector<8x8xf32>
    %cst_36 = arith.constant 0.000000e+00 : f32
    %88 = vector.broadcast %cst_36 : f32 to vector<8x8xf32>
    %89 = arith.select %78, %87, %88 : vector<8x8xi1>, vector<8x8xf32>
    %cst_37 = arith.constant dense<0.000000e+00> : vector<8xf32>
    %90 = vector.multi_reduction <add>, %89, %cst_37 [0] : vector<8x8xf32> to vector<8xf32>
    %91 = vector.shape_cast %90 : vector<8xf32> to vector<1x8xf32>
    %cst_38 = arith.constant 1.000000e+00 : f32
    %92 = vector.broadcast %cst_38 : f32 to vector<1x8xf32>
    %93 = arith.addf %92, %91 : vector<1x8xf32>
    %94 = math.log %93 : vector<1x8xf32>
    %cst_39 = arith.constant 2.500000e-02 : f32
    %95 = vector.broadcast %cst_39 : f32 to vector<1x8xf32>
    %96 = arith.mulf %95, %94 : vector<1x8xf32>
    %97 = tpu.iota {dimensions = array<i32: 1>} : vector<1x8xi32>
    %c8_i32_40 = arith.constant 8 : i32
    %98 = arith.muli %arg0, %c8_i32_40 : i32
    %99 = vector.broadcast %98 : i32 to vector<1x8xi32>
    %100 = arith.addi %97, %99 : vector<1x8xi32>
    %101 = arith.subi %1, %0 : i32
    %102 = vector.broadcast %101 : i32 to vector<1x8xi32>
    %103 = arith.cmpi slt, %100, %102 : vector<1x8xi32>
    %cst_41 = arith.constant 1.000000e+00 : f32
    %104 = vector.broadcast %cst_41 : f32 to vector<1x8xf32>
    %105 = arith.cmpf oge, %59, %104 : vector<1x8xf32>
    %106 = arith.andi %103, %105 : vector<1x8xi1>
    %cst_42 = arith.constant 1.000000e+00 : f32
    %107 = vector.broadcast %cst_42 : f32 to vector<1x8xf32>
    %108 = arith.cmpf oge, %82, %107 : vector<1x8xf32>
    %109 = arith.andi %106, %108 : vector<1x8xi1>
    %110 = arith.addf %73, %96 : vector<1x8xf32>
    %cst_43 = arith.constant 0.000000e+00 : f32
    %111 = vector.broadcast %cst_43 : f32 to vector<1x8xf32>
    %112 = arith.select %109, %110, %111 : vector<1x8xi1>, vector<1x8xf32>
    %c0_44 = arith.constant 0 : index
    %c0_45 = arith.constant 0 : index
    %113 = vector.load %arg6[%c0_44, %c0_45] : memref<1x8xf32, #tpu.memory_space<vmem>>, vector<1x8xf32>
    tpu.vector_store %arg6[%c0_44, %c0_45], %112 {strides = array<i32>} : memref<1x8xf32, #tpu.memory_space<vmem>>, vector<1x8xf32>,
    return
  }
  func.func @transform_0(%arg0: i32, %arg1: memref<2xi32, #tpu.memory_space<smem>>) -> (i32, i32) {
    %c0_i32 = arith.constant 0 : i32
    %c0_i32_0 = arith.constant 0 : i32
    return %arg0, %c0_i32 : i32, i32
  }
  func.func @transform_1(%arg0: i32, %arg1: memref<2xi32, #tpu.memory_space<smem>>) -> (i32, i32) {
    %c0_i32 = arith.constant 0 : i32
    %c0_i32_0 = arith.constant 0 : i32
    %c0_i32_1 = arith.constant 0 : i32
    return %c0_i32, %c0_i32_0 : i32, i32
  }
  func.func @transform_2(%arg0: i32, %arg1: memref<2xi32, #tpu.memory_space<smem>>) -> (i32, i32) {
    %c0_i32 = arith.constant 0 : i32
    %c0_i32_0 = arith.constant 0 : i32
    %c0_i32_1 = arith.constant 0 : i32
    return %c0_i32, %c0_i32_0 : i32, i32
  }
  func.func @transform_3(%arg0: i32, %arg1: memref<2xi32, #tpu.memory_space<smem>>) -> (i32, i32) {
    %c0_i32 = arith.constant 0 : i32
    %c0_i32_0 = arith.constant 0 : i32
    return %c0_i32, %arg0 : i32, i32
  }
  func.func @transform_4(%arg0: i32, %arg1: memref<2xi32, #tpu.memory_space<smem>>) -> (i32, i32) {
    %c0_i32 = arith.constant 0 : i32
    %c0_i32_0 = arith.constant 0 : i32
    return %c0_i32, %arg0 : i32, i32
  }
}

</mosaic_0001>

<llo_original>
// kernel: multi_similarity_loss.1
$region0: #{multi_similarity_loss.1}
  #allocation0 [shape = 'u32[]', space=smem, size = 0x4, offset = 0x4, fixed_abs, tag = 'smem constant byte address 0x4 - core index']
  #allocation1 [shape = 'u32[72,128]{1,0:T(1,128)}', space=vmem, size = 0x9000, scoped, tag = 'internal scratch']
  #allocation2 [shape = 's32[1]{0}', space=sflag, size = 0x4, scoped, tag = 'scoped memory for multi_similarity_loss.1']
  #allocation3 [shape = 'u8[512]{0}', space=smem, size = 0x200, scoped, tag = 'prefetched SMEM operand 0']
  %s0 = inlined_call_operand.vmem [shape: s32[2], index: 0, kind: input, shape index: {}]
  %s1 = inlined_call_operand.vmem [shape: bf16[8,32], index: 1, kind: input, shape index: {}, may-alias: {1,2}]
  %s2 = inlined_call_operand.vmem [shape: bf16[8,32], index: 2, kind: input, shape index: {}, may-alias: {1,2}]
  %s3 = inlined_call_operand.vmem [shape: s32[8,1], index: 3, kind: input, shape index: {}]
  %s4 = inlined_call_operand.vmem [shape: s32[1,8], index: 4, kind: input, shape index: {}]
  %s5 = inlined_call_operand.vmem [shape: f32[1,8], index: 5, kind: output, shape index: {}]
  %s6 = sld [smem:[#allocation0]]
  $region26: #{multi_similarity_loss.1} parent=0
    _
  %s8 = ssub.s32 1, %s6
  %s9 = scalar_select 0, %s8, %s6
  %s11 = sshll.u32 %s0, 4
  %s12 = int_to_ptr.vmem [resolvable:$true] %s11
  %14 = dma.vmem_to_smem %s12, 16, [#allocation3], [#allocation2]
  %16 = dma.done [#allocation2], 16
  %17 = sfence
  // Predicated region
  $region2: #{multi_similarity_loss.1} parent=0 // pred_check
    _
  $region3: #{multi_similarity_loss.1} parent=0 // pred_check_branch
    %19 = sbr.rel (0) target = $region5
  $region4: #{multi_similarity_loss.1} parent=0 // pred_region
    _
  $region5: #{multi_similarity_loss.1} parent=0 // pred_fallthru
    _
  // Predicated region
  $region6: #{multi_similarity_loss.1} parent=0 // pred_check
    _
  $region7: #{multi_similarity_loss.1} parent=0 // pred_check_branch
    %21 = sbr.rel (0) target = $region9
  $region8: #{multi_similarity_loss.1} parent=0 // pred_region
    _
  $region9: #{multi_similarity_loss.1} parent=0 // pred_fallthru
    _
  // Predicated region
  $region10: #{multi_similarity_loss.1} parent=0 // pred_check
    _
  $region11: #{multi_similarity_loss.1} parent=0 // pred_check_branch
    %23 = sbr.rel (0) target = $region13
  $region12: #{multi_similarity_loss.1} parent=0 // pred_region
    _
  $region13: #{multi_similarity_loss.1} parent=0 // pred_fallthru
    _
  // Predicated region
  $region14: #{multi_similarity_loss.1} parent=0 // pred_check
    _
  $region15: #{multi_similarity_loss.1} parent=0 // pred_check_branch
    %25 = sbr.rel (0) target = $region17
  $region16: #{multi_similarity_loss.1} parent=0 // pred_region
    _
  $region17: #{multi_similarity_loss.1} parent=0 // pred_fallthru
    _
  %s27 = sld [smem:[#allocation3]]
  %s28 = sld [smem:[#allocation3 + $0x1]]
  %v29 = vld [vmem:[%s2] sm:$0xf]
  %v30 = vld [vmem:[%s1] sm:$0xf]
  %vm31 = vcmask 261120
  %v33 = vsel %vm31, %v29, 0
  %v36 = vsel %vm31, %v30, 0
  %38 = vmatpush.bf16.xpose.msra.mxu0 0
  %39 = vmatpush.bf16.xpose.msra.mxu0 0
  %40 = vmatpush.bf16.xpose.msra.mxu0 0
  %41 = vmatpush.bf16.xpose.msra.mxu0 0
  %42 = vmatpush.bf16.xpose.msra.mxu0 0
  %43 = vmatpush.bf16.xpose.msra.mxu0 0
  %44 = vmatpush.bf16.xpose.msra.mxu0 0
  %45 = vmatpush.bf16.xpose.msra.mxu0 %v36
  %46 = vmatmul.bf16.gmra.mxu0 %v33
  %v47 = vpop.f32.mrf.mxu0
  %v48 = vadd.f32 0.0, %v47
  %v49 = vpop.f32.mrf.mxu0
  %50 = vdwg.mxu0
  %v51 = vld [vmem:[%s3] sm:$0xff]
  %v52 = vld [vmem:[%s4] sm:$0x1]
  %53 = vset.pattern.permute.xlu0 0
  %54 = vperm.xlu0 %53, %v51
  %v55 = vpop.permute.xlu0 %54
  %v56 = vperm.slane %v52, 0
  %vm57 = vcmp.eq.s32.totalorder %v55, %v56
  %v58 = vlaneseq
  %v59 = vshrl.u32 %v58, 7
  %v60 = vlaneseq
  %v61 = vand.u32 %v60, 127
  %s62 = smul.u32 0, 8
  %v63 = vstv %s62
  %v64 = vadd.s32 %v61, %v63
  %v65 = vstv %s28
  %vm66 = vcmp.lt.s32.totalorder %v59, %v65
  %vm67 = vcmp.ne.s32.totalorder %v59, %v64
  %vm68 = vcmp.lt.f32.partialorder %v48, 0.99999
  %vm69 = vmand %vm57, %vm68
  %vm70 = vmand %vm69, %vm67
  %vm71 = vmand %vm70, %vm66
  %v72 = vsel %vm71, 1.0, 0.0
  %vm73 = vcmask 64512
  %v74 = vsel %vm73, %v72, -inf
  %v75 = vrot.slane %v74, 4
  %v76 = vmax.f32 %v74, %v75
  %v77 = vrot.slane %v76, 2
  %v78 = vmax.f32 %v76, %v77
  %v79 = vrot.slane %v78, 1
  %v80 = vmax.f32 %v78, %v79
  %vm81 = vcmp.gt.f32.partialorder %v80, 0.0
  %v82 = vsel %vm71, %v48, inf
  %v83 = vsel %vm73, %v82, inf
  %v84 = vrot.slane %v83, 4
  %v85 = vmin.f32 %v83, %v84
  %v86 = vrot.slane %v85, 2
  %v87 = vmin.f32 %v85, %v86
  %v88 = vrot.slane %v87, 1
  %v89 = vmin.f32 %v87, %v88
  %vm90 = vmxor %vm57, 1
  %vm91 = vmand %vm90, %vm66
  %v92 = vsel %vm91, 1.0, 0.0
  %v93 = vsel %vm73, %v92, -inf
  %v94 = vrot.slane %v93, 4
  %v95 = vmax.f32 %v93, %v94
  %v96 = vrot.slane %v95, 2
  %v97 = vmax.f32 %v95, %v96
  %v98 = vrot.slane %v97, 1
  %v99 = vmax.f32 %v97, %v98
  %vm100 = vcmp.gt.f32.partialorder %v99, 0.0
  %v101 = vsel %vm91, %v48, -inf
  %v102 = vsel %vm73, %v101, -inf
  %v103 = vrot.slane %v102, 4
  %v104 = vmax.f32 %v102, %v103
  %v105 = vrot.slane %v104, 2
  %v106 = vmax.f32 %v104, %v105
  %v107 = vrot.slane %v106, 1
  %v108 = vmax.f32 %v106, %v107
  %v109 = vsel %vm81, %v89, 0.2
  %v110 = vsel %vm100, %v108, 0.8
  %v111 = vsub.f32 %v48, 0.1
  %vm112 = vcmp.lt.f32.partialorder %v111, %v110
  %vm113 = vmand %vm71, %vm112
  %v114 = vsel %vm113, 1, 0
  %v115 = vcvt.s32.f32 %v114
  %v116 = vsel %vm73, %v115, 0.0
  %v117 = vrot.slane %v116, 4
  %v118 = vadd.f32 %v116, %v117
  %v119 = vrot.slane %v118, 2
  %v120 = vadd.f32 %v118, %v119
  %v121 = vrot.slane %v120, 1
  %v122 = vadd.f32 %v120, %v121
  %v123 = vsub.f32 %v48, 0.5
  %v124 = vmul.f32 %v123, -2.0
  %v125 = vmul.f32 %v124, 1.442695
  %v126 = vpow.pop %v125
  %v127 = vsel %vm113, %v126, 0.0
  %v128 = vsel %vm73, %v127, 0.0
  %v129 = vrot.slane %v128, 4
  %v130 = vadd.f32 %v128, %v129
  %v131 = vrot.slane %v130, 2
  %v132 = vadd.f32 %v130, %v131
  %v133 = vrot.slane %v132, 1
  %v134 = vadd.f32 %v132, %v133
  %v135 = vadd.f32 %v134, 1.0
  %v136 = vlog2.pop %v135
  %v137 = vmul.f32 %v136, 0.6931472
  %v138 = vmul.f32 %v137, 0.5
  %v139 = vadd.f32 %v48, 0.1
  %vm140 = vcmp.gt.f32.partialorder %v139, %v109
  %vm141 = vmand %vm91, %vm140
  %v142 = vsel %vm141, 1, 0
  %v143 = vcvt.s32.f32 %v142
  %v144 = vsel %vm73, %v143, 0.0
  %v145 = vrot.slane %v144, 4
  %v146 = vadd.f32 %v144, %v145
  %v147 = vrot.slane %v146, 2
  %v148 = vadd.f32 %v146, %v147
  %v149 = vrot.slane %v148, 1
  %v150 = vadd.f32 %v148, %v149
  %v151 = vmul.f32 %v123, 40.0
  %v152 = vmul.f32 %v151, 1.442695
  %v153 = vpow.pop %v152
  %v154 = vsel %vm141, %v153, 0.0
  %v155 = vsel %vm73, %v154, 0.0
  %v156 = vrot.slane %v155, 4
  %v157 = vadd.f32 %v155, %v156
  %v158 = vrot.slane %v157, 2
  %v159 = vadd.f32 %v157, %v158
  %v160 = vrot.slane %v159, 1
  %v161 = vadd.f32 %v159, %v160
  %v162 = vadd.f32 %v161, 1.0
  %v163 = vlog2.pop %v162
  %v164 = vmul.f32 %v163, 0.6931472
  %v165 = vmul.f32 %v164, 0.025
  %s166 = ssub.s32 %s28, %s27
  %v167 = vstv %s166
  %vm168 = vcmp.lt.s32.totalorder %v64, %v167
  %vm169 = vcmp.ge.f32.partialorder %v122, 1.0
  %vm170 = vmand %vm168, %vm169
  %vm171 = vcmp.ge.f32.partialorder %v150, 1.0
  %vm172 = vmand %vm170, %vm171
  %v173 = vadd.f32 %v138, %v165
  %v174 = vsel %vm172, %v173, 0.0
  %vm175 = vcmask 57344
  %176 = vst.msk [vmem:[%s5] sm:$0x1] %vm175, %v174
  // Predicated region
  $region18: #{multi_similarity_loss.1} parent=0 // pred_check
    _
  $region19: #{multi_similarity_loss.1} parent=0 // pred_check_branch
    %178 = sbr.rel (0) target = $region21
  $region20: #{multi_similarity_loss.1} parent=0 // pred_region
    _
  $region21: #{multi_similarity_loss.1} parent=0 // pred_fallthru
    _
  // Predicated region
  $region22: #{multi_similarity_loss.1} parent=0 // pred_check
    _
  $region23: #{multi_similarity_loss.1} parent=0 // pred_check_branch
    %180 = sbr.rel (0) target = $region25
  $region24: #{multi_similarity_loss.1} parent=0 // pred_region
    _
  $region25: #{multi_similarity_loss.1} parent=0 // pred_fallthru
    _

</llo_original>
